<compile_context>
chip_gen: v5e
topology: v5e:2x2
jax: 0.10.0
libtpu: 0.0.40
codegen_flags: <defaults>
</compile_context>

<pallas_src>
import functools

import jax
import jax.numpy as jnp
import numpy as np
from jax.experimental import pallas as pl
from jax.experimental.pallas import tpu as pltpu


def _round_up(n: int, m: int) -> int:
    return (n + m - 1) // m * m


def _pointwise_conv1d_kernel(x_ref, w_ref, b_ref, o_ref, *, matmul_dtype):
    # x_ref: (1, C_in_p, TT)   one (batch, time-tile) slab, channels on sublanes
    # w_ref: (C_out_p, C_in_p) VMEM-resident weight (constant index_map)
    # b_ref: (C_out_p, 1)      VMEM-resident bias (broadcast over lanes)
    # o_ref: (1, C_out_p, TT)
    x = x_ref[0]                                  # (C_in_p, TT)
    if matmul_dtype is not None:
        x = x.astype(matmul_dtype)                # weight pre-cast once in wrapper
    acc = jnp.dot(w_ref[...], x, preferred_element_type=jnp.float32)  # (C_out_p, TT)
    o_ref[0] = (acc + b_ref[...]).astype(o_ref.dtype)


def pointwise_conv1d(x, weight, bias=None, *, stride=1, padding=0,
                     block_time=1024, matmul_dtype=None):
    """Pointwise (kernel_size=1) Conv1d, PyTorch semantics.

    x:      (B, C_in, T) float32      -- (batch, in_channels, time)
    weight: (C_out, C_in, 1) or (C_out, C_in)
    bias:   (C_out,) or None
    returns (B, C_out, T_out), T_out = (T + 2*padding - 1) // stride + 1
    """
    B, C_in, T = x.shape
    if weight.ndim == 3:
        weight = weight[:, :, 0]
    C_out = weight.shape[0]

    # kernel window is 1 -> stride/padding are pure time-axis selection.
    if padding:
        x = jnp.pad(x, ((0, 0), (0, 0), (padding, padding)))
    if stride != 1:
        x = x[:, :, ::stride]
    T_out = x.shape[2]

    # Channel padding to sublane granularity (usually a no-op for typical widths).
    C_in_p = _round_up(C_in, 8)
    C_out_p = _round_up(C_out, 8)

    # Time tiling: lane-dense (multiple of 128), capped by block_time.
    T_p = _round_up(T_out, 128)
    TT = min(_round_up(block_time, 128), T_p)
    T_pp = _round_up(T_p, TT)

    xp = jnp.pad(x, ((0, 0), (0, C_in_p - C_in), (0, T_pp - T_out)))
    w = jnp.pad(weight, ((0, C_out_p - C_out), (0, C_in_p - C_in)))   # (C_out_p, C_in_p)
    if bias is None:
        b = jnp.zeros((C_out_p, 1), jnp.float32)
    else:
        b = jnp.pad(bias.reshape(C_out, 1), ((0, C_out_p - C_out), (0, 0)))
    if matmul_dtype is not None:
        w = w.astype(matmul_dtype)        # cast the resident weight once, not per tile

    n_t = T_pp // TT
    grid = (B, n_t)

    # VMEM budget: double-buffered x/out tiles + resident weight/bias, 2x headroom,
    # clamped so it also fits v7x's 64 MiB physical VMEM.
    vmem_bytes = 4 * (2 * TT * (C_in_p + C_out_p) + C_in_p * C_out_p + C_out_p)
    vmem_limit = int(min(max(2 * vmem_bytes, 4 << 20), 64 << 20))

    out_p = pl.pallas_call(
        functools.partial(_pointwise_conv1d_kernel, matmul_dtype=matmul_dtype),
        out_shape=jax.ShapeDtypeStruct((B, C_out_p, T_pp), x.dtype),
        grid_spec=pltpu.PrefetchScalarGridSpec(
            num_scalar_prefetch=0,
            grid=grid,
            in_specs=[
                pl.BlockSpec((1, C_in_p, TT), lambda bi, ti: (bi, 0, ti)),   # x slab
                pl.BlockSpec((C_out_p, C_in_p), lambda bi, ti: (0, 0)),      # weight
                pl.BlockSpec((C_out_p, 1), lambda bi, ti: (0, 0)),           # bias
            ],
            out_specs=pl.BlockSpec((1, C_out_p, TT), lambda bi, ti: (bi, 0, ti)),
        ),
        compiler_params=pltpu.CompilerParams(
            dimension_semantics=("parallel", "parallel"),
            vmem_limit_bytes=vmem_limit,
        ),
    )(xp, w, b)

    return out_p[:, :C_out, :T_out]                        # (B, C_out, T_out)


def reference_forward(x, weight, bias):
    """Pure-JAX reference mirroring nn.Conv1d(kernel_size=1, stride=1, padding=0)."""
    w2 = weight[:, :, 0] if weight.ndim == 3 else weight
    out = jnp.einsum("bct,oc->bot", x, w2, precision=jax.lax.Precision.HIGHEST)
    if bias is not None:
        out = out + bias[None, :, None]
    return out


if __name__ == "__main__":
    B, C_in, C_out, T = 2, 64, 96, 200     # non-multiple T exercises time padding
    key = jax.random.PRNGKey(0)
    kx, kw, kb = jax.random.split(key, 3)

    x = jax.random.normal(kx, (B, C_in, T), jnp.float32)
    # PyTorch Conv1d parameter layout: weight (C_out, C_in, 1), bias (C_out,)
    bound = 1.0 / np.sqrt(C_in)            # kernel_size = 1
    weight = jax.random.uniform(kw, (C_out, C_in, 1), jnp.float32, -bound, bound)
    bias = jax.random.uniform(kb, (C_out,), jnp.float32, -bound, bound)

    out = pointwise_conv1d(x, weight, bias)
    out = jax.block_until_ready(out)

    ref = reference_forward(x, weight, bias)
    np.testing.assert_allclose(np.asarray(out), np.asarray(ref), rtol=1e-3, atol=1e-3)
    assert out.shape == (B, C_out, T)

    print("KERNEL_OK")
</pallas_src>

<mosaic_0001>
module attributes {stable_mosaic.version = 11 : i64} {
  func.func @_pointwise_conv1d_kernel(%arg0: i32, %arg1: i32, %arg2: memref<1x64x256xf32, #tpu.memory_space<vmem>>, %arg3: memref<96x64xf32, #tpu.memory_space<vmem>>, %arg4: memref<96x1xf32, #tpu.memory_space<vmem>>, %arg5: memref<1x96x256xf32, #tpu.memory_space<vmem>>) attributes {dimension_semantics = [#tpu.dimension_semantics<parallel>, #tpu.dimension_semantics<parallel>], iteration_bounds = array<i64: 2, 1>, scalar_prefetch = 0 : i64, scratch_operands = 0 : i64, tpu.core_type = #tpu.core_type<tc>, window_params = [{transform_indices = @transform_0, window_bounds = array<i64: 1, 64, 256>}, {pipeline_mode = #tpu.pipeline_mode<synchronous>, transform_indices = @transform_1, window_bounds = array<i64: 96, 64>}, {pipeline_mode = #tpu.pipeline_mode<synchronous>, transform_indices = @transform_2, window_bounds = array<i64: 96, 1>}, {transform_indices = @transform_3, window_bounds = array<i64: 1, 96, 256>}]} {
    %c0 = arith.constant 0 : index
    %c0_0 = arith.constant 0 : index
    %c0_1 = arith.constant 0 : index
    %0 = vector.load %arg2[%c0, %c0_0, %c0_1] : memref<1x64x256xf32, #tpu.memory_space<vmem>>, vector<1x64x256xf32>
    %1 = vector.shape_cast %0 : vector<1x64x256xf32> to vector<64x256xf32>
    %c0_2 = arith.constant 0 : index
    %c0_3 = arith.constant 0 : index
    %2 = vector.load %arg3[%c0_2, %c0_3] : memref<96x64xf32, #tpu.memory_space<vmem>>, vector<96x64xf32>
    %cst = arith.constant dense<0.000000e+00> : vector<96x256xf32>
    %3 = tpu.matmul %2, %1, %cst {dimension_numbers = #tpu.dot_dimension_numbers<[1], [0], [0], [1], [0, 0, 1, 1], [], []>} : vector<96x64xf32>, vector<64x256xf32>, vector<96x256xf32> -> vector<96x256xf32>
    %c0_4 = arith.constant 0 : index
    %c0_5 = arith.constant 0 : index
    %4 = vector.load %arg4[%c0_4, %c0_5] : memref<96x1xf32, #tpu.memory_space<vmem>>, vector<96x1xf32>
    %5 = vector.broadcast %4 : vector<96x1xf32> to vector<96x256xf32>
    %6 = arith.addf %3, %5 : vector<96x256xf32>
    %c0_6 = arith.constant 0 : index
    %c0_7 = arith.constant 0 : index
    %c0_8 = arith.constant 0 : index
    %7 = vector.load %arg5[%c0_6, %c0_7, %c0_8] : memref<1x96x256xf32, #tpu.memory_space<vmem>>, vector<1x96x256xf32>
    %8 = vector.shape_cast %7 : vector<1x96x256xf32> to vector<96x256xf32>
    %9 = vector.shape_cast %6 : vector<96x256xf32> to vector<1x96x256xf32>
    tpu.vector_store %arg5[%c0_6, %c0_7, %c0_8], %9 {strides = array<i32>} : memref<1x96x256xf32, #tpu.memory_space<vmem>>, vector<1x96x256xf32>,
    return
  }
  func.func @transform_0(%arg0: i32, %arg1: i32) -> (i32, i32, i32) {
    %c0_i32 = arith.constant 0 : i32
    %c0_i32_0 = arith.constant 0 : i32
    return %arg0, %c0_i32, %arg1 : i32, i32, i32
  }
  func.func @transform_1(%arg0: i32, %arg1: i32) -> (i32, i32) {
    %c0_i32 = arith.constant 0 : i32
    %c0_i32_0 = arith.constant 0 : i32
    %c0_i32_1 = arith.constant 0 : i32
    return %c0_i32, %c0_i32_0 : i32, i32
  }
  func.func @transform_2(%arg0: i32, %arg1: i32) -> (i32, i32) {
    %c0_i32 = arith.constant 0 : i32
    %c0_i32_0 = arith.constant 0 : i32
    %c0_i32_1 = arith.constant 0 : i32
    return %c0_i32, %c0_i32_0 : i32, i32
  }
  func.func @transform_3(%arg0: i32, %arg1: i32) -> (i32, i32, i32) {
    %c0_i32 = arith.constant 0 : i32
    %c0_i32_0 = arith.constant 0 : i32
    return %arg0, %c0_i32, %arg1 : i32, i32, i32
  }
}

</mosaic_0001>

<llo_original>
// kernel: tpu_custom_call.1
$region0: #{tpu_custom_call.1}
  #allocation0 [shape = 'u32[]', space=smem, size = 0x4, offset = 0x4, fixed_abs, tag = 'smem constant byte address 0x4 - core index']
  #allocation1 [shape = 'u32[72,128]{1,0:T(1,128)}', space=vmem, size = 0x9000, scoped, tag = 'internal scratch']
  %s0 = inlined_call_operand.vmem [shape: f32[2,64,256], index: 0, kind: input, shape index: {}]
  %s1 = inlined_call_operand.vmem [shape: f32[96,64], index: 1, kind: input, shape index: {}]
  %s2 = inlined_call_operand.vmem [shape: f32[96,1], index: 2, kind: input, shape index: {}]
  %s3 = inlined_call_operand.hbm [shape: f32[2,96,256], index: 3, kind: output, shape index: {}]
  %s4 = sld [smem:[#allocation0]]
  $region45: #{tpu_custom_call.1} parent=0
    _
  %s6 = ssub.s32 1, %s4
  %s7 = scalar_select 0, %s6, %s4
  $region1: #{tpu_custom_call.1} parent=0
    #allocation2 [shape = 'u8[196608]{0}', space=vmem, size = 0x30000, scoped, tag = 'output window, operand 0']
    #allocation3 [shape = 's32[2]{0}', space=sflag, size = 0x8, scoped, tag = 'scoped memory for tpu_custom_call.1']
    %8 = vsyncpa [#allocation3], 0
    %s9 = scalar_lea.sflag [#allocation3], 1
    %10 = vsyncpa %s9, 0
    loop: start=0, step=1, limit=4
    $region2: #{tpu_custom_call.1} parent=1 // loop_pre_header
      _
    $region3: #{tpu_custom_call.1} parent=1 // loop_header
      %s12 = sphi 0, %s16
      %p13 = scmp.ge.s32.totalorder %s12, 4
      %s19 = sphi 0, %s31
      %s20 = sphi 0, %s27
      %s21 = sphi 0, %s19
      %s22 = sphi 0, %s20
      %s23 = sphi 0, %s21
      %s24 = sphi 0, %s22
      %s36 = sphi 0, %s38
      %s39 = sphi 0, %s36
      %s40 = sphi 0, %s39
      %s56 = sphi 0, %s40
      %s60 = sphi 0, %s60
      %s62 = sphi 0, %s60
      %s63 = sphi 0, %s62
      %s77 = sphi 0, %s63
      %s81 = sphi 0, %s81
      %s83 = sphi 0, %s81
      %s84 = sphi 0, %s83
      %s98 = sphi 0, %s84
      %s106 = sphi 0, %s108
      %s109 = sphi 0, %s106
      %s110 = sphi 0, %s109
      %s126 = sphi 0, %s110
    $region4: #{tpu_custom_call.1} parent=1 // loop_header_branch
      %15 = sbr.rel (%p13) target = $region8
    $region5: #{tpu_custom_call.1} parent=1 // loop_body
      %s17 = ssub.s32 %s12, 1
      %s18 = ssub.s32 %s12, 2
      %s25 = sadd.s32 1, %s20
      %p26 = scmp.ge.s32.totalorder %s25, 1
      %s27 = scalar_select %p26, 0, %s25
      %s28 = sadd.s32 1, %s19
      %s29 = scalar_select %p26, %s28, %s19
      %p30 = scmp.ge.s32.totalorder %s29, 2
      %s31 = scalar_select %p30, 0, %s29
      %s32 = ssub.s32 %s19, %s31
      %s33 = ssub.s32 %s20, %s27
      %s34 = sor.u32 %s32, %s33
      %p35 = scmp.eq.s32.totalorder %s34, 0
      %s37 = sadd.s32 %s36, 1
      %s38 = scalar_select %p35, %s36, %s37
      %p41 = pneg %p35
      %p42 = scmp.eq.s32.totalorder %s12, 1
      %p43 = por %p41, %p42
      %p44 = scmp.ne.s32.totalorder %s36, %s39
      %p45 = scmp.eq.s32.totalorder %s12, 0
      %p46 = por %p44, %p45
      %p47 = scmp.ne.s32.totalorder %s36, %s39
      %p48 = scmp.eq.s32.totalorder %s17, 1
      %p49 = por %p47, %p48
      %p50 = scmp.ne.s32.totalorder %s39, %s40
      %p51 = scmp.eq.s32.totalorder %s17, 0
      %p52 = por %p50, %p51
      %p53 = scmp.ne.s32.totalorder %s39, %s40
      %p54 = scmp.eq.s32.totalorder %s18, 1
      %p55 = por %p53, %p54
      %p57 = scmp.ne.s32.totalorder %s40, %s56
      %p58 = scmp.eq.s32.totalorder %s18, 0
      %p59 = por %p57, %p58
      %s61 = sadd.s32 %s60, 1
      %p64 = scmp.eq.s32.totalorder %s12, 1
      %p65 = scmp.ne.s32.totalorder %s60, %s62
      %p66 = scmp.eq.s32.totalorder %s12, 0
      %p67 = por %p65, %p66
      %p68 = scmp.ne.s32.totalorder %s60, %s62
      %p69 = scmp.eq.s32.totalorder %s17, 1
      %p70 = por %p68, %p69
      %p71 = scmp.ne.s32.totalorder %s62, %s63
      %p72 = scmp.eq.s32.totalorder %s17, 0
      %p73 = por %p71, %p72
      %p74 = scmp.ne.s32.totalorder %s62, %s63
      %p75 = scmp.eq.s32.totalorder %s18, 1
      %p76 = por %p74, %p75
      %p78 = scmp.ne.s32.totalorder %s63, %s77
      %p79 = scmp.eq.s32.totalorder %s18, 0
      %p80 = por %p78, %p79
      %s82 = sadd.s32 %s81, 1
      %p85 = scmp.eq.s32.totalorder %s12, 1
      %p86 = scmp.ne.s32.totalorder %s81, %s83
      %p87 = scmp.eq.s32.totalorder %s12, 0
      %p88 = por %p86, %p87
      %p89 = scmp.ne.s32.totalorder %s81, %s83
      %p90 = scmp.eq.s32.totalorder %s17, 1
      %p91 = por %p89, %p90
      %p92 = scmp.ne.s32.totalorder %s83, %s84
      %p93 = scmp.eq.s32.totalorder %s17, 0
      %p94 = por %p92, %p93
      %p95 = scmp.ne.s32.totalorder %s83, %s84
      %p96 = scmp.eq.s32.totalorder %s18, 1
      %p97 = por %p95, %p96
      %p99 = scmp.ne.s32.totalorder %s84, %s98
      %p100 = scmp.eq.s32.totalorder %s18, 0
      %p101 = por %p99, %p100
      %s102 = ssub.s32 %s19, %s31
      %s103 = ssub.s32 %s20, %s27
      %s104 = sor.u32 %s102, %s103
      %p105 = scmp.eq.s32.totalorder %s104, 0
      %s107 = sadd.s32 %s106, 1
      %s108 = scalar_select %p105, %s106, %s107
      %p111 = pneg %p105
      %p112 = scmp.eq.s32.totalorder %s12, 1
      %p113 = por %p111, %p112
      %p114 = scmp.ne.s32.totalorder %s106, %s109
      %p115 = scmp.eq.s32.totalorder %s12, 0
      %p116 = por %p114, %p115
      %p117 = scmp.ne.s32.totalorder %s106, %s109
      %p118 = scmp.eq.s32.totalorder %s17, 1
      %p119 = por %p117, %p118
      %p120 = scmp.ne.s32.totalorder %s109, %s110
      %p121 = scmp.eq.s32.totalorder %s17, 0
      %p122 = por %p120, %p121
      %p123 = scmp.ne.s32.totalorder %s109, %s110
      %p124 = scmp.eq.s32.totalorder %s18, 1
      %p125 = por %p123, %p124
      %p127 = scmp.ne.s32.totalorder %s110, %s126
      %p128 = scmp.eq.s32.totalorder %s18, 0
      %p129 = por %p127, %p128
      %p130 = scmp.le.s32.totalorder 1, %s12
      %p131 = scmp.lt.s32.totalorder %s12, 3
      %p132 = pnand %p130, %p131
      %p133 = pneg %p132
      // Predicated region
      $region9: #{tpu_custom_call.1} parent=5 // pred_check
        _
      $region10: #{tpu_custom_call.1} parent=5 // pred_check_branch
        %135 = sbr.rel (%p132) target = $region12
      $region11: #{tpu_custom_call.1} parent=5 // pred_region
        %s136 = ssub.s32 %s12, 1
        // Predicated region
        $region13: #{tpu_custom_call.1} parent=11 // pred_check
          %p137 = pneg %p73
        $region14: #{tpu_custom_call.1} parent=11 // pred_check_branch
          %139 = sbr.rel (%p137) target = $region16
        $region15: #{tpu_custom_call.1} parent=11 // pred_region
          _
        $region16: #{tpu_custom_call.1} parent=11 // pred_fallthru
          _
        // Predicated region
        $region17: #{tpu_custom_call.1} parent=11 // pred_check
          %p140 = pneg %p94
        $region18: #{tpu_custom_call.1} parent=11 // pred_check_branch
          %142 = sbr.rel (%p140) target = $region20
        $region19: #{tpu_custom_call.1} parent=11 // pred_region
          _
        $region20: #{tpu_custom_call.1} parent=11 // pred_fallthru
          _
      $region12: #{tpu_custom_call.1} parent=5 // pred_fallthru
        _
      %p143 = scmp.lt.s32.totalorder %s12, 2
      // Predicated region
      $region21: #{tpu_custom_call.1} parent=5 // pred_check
        %p144 = pneg %p143
      $region22: #{tpu_custom_call.1} parent=5 // pred_check_branch
        %146 = sbr.rel (%p144) target = $region24
      $region23: #{tpu_custom_call.1} parent=5 // pred_region
        // Predicated region
        $region25: #{tpu_custom_call.1} parent=23 // pred_check
          %p147 = pneg %p46
        $region26: #{tpu_custom_call.1} parent=23 // pred_check_branch
          %149 = sbr.rel (%p147) target = $region28
        $region27: #{tpu_custom_call.1} parent=23 // pred_region
          %s150 = smul.u32 2, %s20
          %p151 = scmp.lt.s32.totalorder %s19, 1
          %s152 = scalar_select %p151, %s19, 1
          %p153 = scmp.lt.s32.totalorder %s150, 1
          %s154 = scalar_select %p153, %s150, 1
          %s155 = smul.addr %s152, 16
          %s156 = sadd.s32 %s154, %s155
          %s157 = smul.addr %s156, 8
          %s158 = scalar_lea.vmem %s0, %s157
          %s159 = smul.u32 2, %s20
        $region28: #{tpu_custom_call.1} parent=23 // pred_fallthru
          _
      $region24: #{tpu_custom_call.1} parent=5 // pred_fallthru
        _
      %p160 = scmp.le.s32.totalorder 1, %s12
      %p161 = scmp.lt.s32.totalorder %s12, 3
      %p162 = pnand %p160, %p161
      %p163 = pneg %p162
      // Predicated region
      $region29: #{tpu_custom_call.1} parent=5 // pred_check
        _
      $region30: #{tpu_custom_call.1} parent=5 // pred_check_branch
        %165 = sbr.rel (%p162) target = $region32
      $region31: #{tpu_custom_call.1} parent=5 // pred_region
        %s166 = ssub.s32 %s12, 1
        %s167 = smul.u32 2, %s22
        %p168 = scmp.lt.s32.totalorder %s21, 1
        %s169 = scalar_select %p168, %s21, 1
        %p170 = scmp.lt.s32.totalorder %s167, 1
        %s171 = scalar_select %p170, %s167, 1
        %s172 = smul.addr %s169, 16
        %s173 = sadd.s32 %s171, %s172
        %s174 = smul.addr %s173, 8
        %s175 = scalar_lea.vmem %s0, %s174
        %p176 = pneg %p52
        %p177 = pneg %p49
        %p178 = pneg %p73
        %p179 = pneg %p70
        %p180 = pneg %p94
        %p181 = pneg %p91
        %p182 = pneg %p122
        %p183 = pneg %p119
        %s184 = sand.u32 %s109, 1
        %s185 = scalar_lea.sflag [#allocation3], %s184
        %s186 = sand.u32 %s109, 1
        %s187 = smul.addr %s186, 192
        %s188 = scalar_lea.vmem [#allocation2], %s187
        %s189 = smul.u32 2, %s22
        %p190 = scmp.lt.s32.totalorder %s21, 1
        %s191 = scalar_select %p190, %s21, 1
        %p192 = scmp.lt.s32.totalorder %s189, 1
        %s193 = scalar_select %p192, %s189, 1
        %s194 = smul.addr %s191, 16
        %s195 = sadd.s32 %s193, %s194
        %s196 = smul.addr %s195, 8
        %s197 = scalar_lea.vmem %s0, %s196
        %s198 = smul.u32 2, %s22
        %s199 = smul.u32 2, %s22
        %v200 = vld [vmem:[%s197] sm:$0xff]
        %v201 = vld [vmem:[%s197 + $0x8] sm:$0xff]
        %v202 = vld [vmem:[%s197 + $0x10] sm:$0xff]
        %v203 = vld [vmem:[%s197 + $0x18] sm:$0xff]
        %v204 = vld [vmem:[%s197 + $0x20] sm:$0xff]
        %v205 = vld [vmem:[%s197 + $0x28] sm:$0xff]
        %v206 = vld [vmem:[%s197 + $0x30] sm:$0xff]
        %v207 = vld [vmem:[%s197 + $0x38] sm:$0xff]
        %v208 = vld [vmem:[%s197 + $0x40] sm:$0xff]
        %v209 = vld [vmem:[%s197 + $0x48] sm:$0xff]
        %v210 = vld [vmem:[%s197 + $0x50] sm:$0xff]
        %v211 = vld [vmem:[%s197 + $0x58] sm:$0xff]
        %v212 = vld [vmem:[%s197 + $0x60] sm:$0xff]
        %v213 = vld [vmem:[%s197 + $0x68] sm:$0xff]
        %v214 = vld [vmem:[%s197 + $0x70] sm:$0xff]
        %v215 = vld [vmem:[%s197 + $0x78] sm:$0xff]
        %v216 = vld [vmem:[%s1] sm:$0xff]
        %v217 = vld [vmem:[%s1 + $0x8] sm:$0xff]
        %v218 = vld [vmem:[%s1 + $0x10] sm:$0xff]
        %v219 = vld [vmem:[%s1 + $0x18] sm:$0xff]
        %v220 = vld [vmem:[%s1 + $0x20] sm:$0xff]
        %v221 = vld [vmem:[%s1 + $0x28] sm:$0xff]
        %v222 = vld [vmem:[%s1 + $0x30] sm:$0xff]
        %v223 = vld [vmem:[%s1 + $0x38] sm:$0xff]
        %v224 = vld [vmem:[%s1 + $0x40] sm:$0xff]
        %v225 = vld [vmem:[%s1 + $0x48] sm:$0xff]
        %v226 = vld [vmem:[%s1 + $0x50] sm:$0xff]
        %v227 = vld [vmem:[%s1 + $0x58] sm:$0xff]
        %v228 = vld [vmem:[%s2] sm:$0xff]
        %v229 = vld [vmem:[%s2 + $0x8] sm:$0xff]
        %v230 = vld [vmem:[%s2 + $0x10] sm:$0xff]
        %v231 = vld [vmem:[%s2 + $0x18] sm:$0xff]
        %v232 = vld [vmem:[%s2 + $0x20] sm:$0xff]
        %v233 = vld [vmem:[%s2 + $0x28] sm:$0xff]
        %v234 = vld [vmem:[%s2 + $0x30] sm:$0xff]
        %v235 = vld [vmem:[%s2 + $0x38] sm:$0xff]
        %v236 = vld [vmem:[%s2 + $0x40] sm:$0xff]
        %v237 = vld [vmem:[%s2 + $0x48] sm:$0xff]
        %v238 = vld [vmem:[%s2 + $0x50] sm:$0xff]
        %v239 = vld [vmem:[%s2 + $0x58] sm:$0xff]
        %241 = vset.pattern.permute.xlu0 0
        %242 = vperm.xlu0 %241, %v228
        %v243 = vpop.permute.xlu0 %242
        %246 = vset.pattern.permute.xlu0 0
        %247 = vperm.xlu0 %246, %v229
        %v248 = vpop.permute.xlu0 %247
        %251 = vset.pattern.permute.xlu0 0
        %252 = vperm.xlu0 %251, %v230
        %v253 = vpop.permute.xlu0 %252
        %256 = vset.pattern.permute.xlu0 0
        %257 = vperm.xlu0 %256, %v231
        %v258 = vpop.permute.xlu0 %257
        %261 = vset.pattern.permute.xlu0 0
        %262 = vperm.xlu0 %261, %v232
        %v263 = vpop.permute.xlu0 %262
        %266 = vset.pattern.permute.xlu0 0
        %267 = vperm.xlu0 %266, %v233
        %v268 = vpop.permute.xlu0 %267
        %271 = vset.pattern.permute.xlu0 0
        %272 = vperm.xlu0 %271, %v234
        %v273 = vpop.permute.xlu0 %272
        %276 = vset.pattern.permute.xlu0 0
        %277 = vperm.xlu0 %276, %v235
        %v278 = vpop.permute.xlu0 %277
        %281 = vset.pattern.permute.xlu0 0
        %282 = vperm.xlu0 %281, %v236
        %v283 = vpop.permute.xlu0 %282
        %286 = vset.pattern.permute.xlu0 0
        %287 = vperm.xlu0 %286, %v237
        %v288 = vpop.permute.xlu0 %287
        %291 = vset.pattern.permute.xlu0 0
        %292 = vperm.xlu0 %291, %v238
        %v293 = vpop.permute.xlu0 %292
        %296 = vset.pattern.permute.xlu0 0
        %297 = vperm.xlu0 %296, %v239
        %v298 = vpop.permute.xlu0 %297
        %vm300 = vcmask 523264
        %v302 = vsel %vm300, %v216, 0
        %v305 = vsel %vm300, %v217, 0
        %v308 = vsel %vm300, %v218, 0
        %v311 = vsel %vm300, %v219, 0
        %v314 = vsel %vm300, %v220, 0
        %v317 = vsel %vm300, %v221, 0
        %v320 = vsel %vm300, %v222, 0
        %v323 = vsel %vm300, %v223, 0
        %v326 = vsel %vm300, %v224, 0
        %v329 = vsel %vm300, %v225, 0
        %v332 = vsel %vm300, %v226, 0
        %v335 = vsel %vm300, %v227, 0
        %337 = vmatpush.msra.mxu0 0.0
        %338 = vmatpush.msra.mxu0 0.0
        %339 = vmatpush.msra.mxu0 0.0
        %340 = vmatpush.msra.mxu0 0.0
        %341 = vmatpush.msra.mxu0 0.0
        %342 = vmatpush.msra.mxu0 0.0
        %343 = vmatpush.msra.mxu0 0.0
        %344 = vmatpush.msra.mxu0 0.0
        %345 = vmatpush.msra.mxu0 %v214
        %346 = vmatpush.msra.mxu0 %v212
        %347 = vmatpush.msra.mxu0 %v210
        %348 = vmatpush.msra.mxu0 %v208
        %349 = vmatpush.msra.mxu0 %v206
        %350 = vmatpush.msra.mxu0 %v204
        %351 = vmatpush.msra.mxu0 %v202
        %352 = vmatpush.msra.mxu0 %v200
        %353 = vmatmul.f32.gmra.mxu0 %v302
        %v354 = vpop.f32.mrf.mxu0
        %v355 = vadd.f32 %v243, %v354
        %356 = vmatmul.f32.gmra.mxu0 %v305
        %v357 = vpop.f32.mrf.mxu0
        %v358 = vadd.f32 %v248, %v357
        %359 = vmatmul.f32.gmra.mxu0 %v308
        %v360 = vpop.f32.mrf.mxu0
        %v361 = vadd.f32 %v253, %v360
        %362 = vmatmul.f32.gmra.mxu0 %v311
        %v363 = vpop.f32.mrf.mxu0
        %v364 = vadd.f32 %v258, %v363
        %365 = vmatmul.f32.gmra.mxu0 %v314
        %v366 = vpop.f32.mrf.mxu0
        %v367 = vadd.f32 %v263, %v366
        %368 = vmatmul.f32.gmra.mxu0 %v317
        %v369 = vpop.f32.mrf.mxu0
        %v370 = vadd.f32 %v268, %v369
        %371 = vmatmul.f32.gmra.mxu0 %v320
        %v372 = vpop.f32.mrf.mxu0
        %v373 = vadd.f32 %v273, %v372
        %374 = vmatmul.f32.gmra.mxu0 %v323
        %v375 = vpop.f32.mrf.mxu0
        %v376 = vadd.f32 %v278, %v375
        %377 = vmatmul.f32.gmra.mxu0 %v326
        %v378 = vpop.f32.mrf.mxu0
        %v379 = vadd.f32 %v283, %v378
        %380 = vmatmul.f32.gmra.mxu0 %v329
        %v381 = vpop.f32.mrf.mxu0
        %v382 = vadd.f32 %v288, %v381
        %383 = vmatmul.f32.gmra.mxu0 %v332
        %v384 = vpop.f32.mrf.mxu0
        %v385 = vadd.f32 %v293, %v384
        %386 = vmatmul.f32.gmra.mxu0 %v335
        %v387 = vpop.f32.mrf.mxu0
        %v388 = vadd.f32 %v298, %v387
        %389 = vdwg.mxu0
        %390 = vmatpush.msra.mxu0 0.0
        %391 = vmatpush.msra.mxu0 0.0
        %392 = vmatpush.msra.mxu0 0.0
        %393 = vmatpush.msra.mxu0 0.0
        %394 = vmatpush.msra.mxu0 0.0
        %395 = vmatpush.msra.mxu0 0.0
        %396 = vmatpush.msra.mxu0 0.0
        %397 = vmatpush.msra.mxu0 0.0
        %398 = vmatpush.msra.mxu0 %v215
        %399 = vmatpush.msra.mxu0 %v213
        %400 = vmatpush.msra.mxu0 %v211
        %401 = vmatpush.msra.mxu0 %v209
        %402 = vmatpush.msra.mxu0 %v207
        %403 = vmatpush.msra.mxu0 %v205
        %404 = vmatpush.msra.mxu0 %v203
        %405 = vmatpush.msra.mxu0 %v201
        %406 = vmatmul.f32.gmra.mxu0 %v302
        %v407 = vpop.f32.mrf.mxu0
        %v408 = vadd.f32 %v243, %v407
        %409 = vmatmul.f32.gmra.mxu0 %v305
        %v410 = vpop.f32.mrf.mxu0
        %v411 = vadd.f32 %v248, %v410
        %412 = vmatmul.f32.gmra.mxu0 %v308
        %v413 = vpop.f32.mrf.mxu0
        %v414 = vadd.f32 %v253, %v413
        %415 = vmatmul.f32.gmra.mxu0 %v311
        %v416 = vpop.f32.mrf.mxu0
        %v417 = vadd.f32 %v258, %v416
        %418 = vmatmul.f32.gmra.mxu0 %v314
        %v419 = vpop.f32.mrf.mxu0
        %v420 = vadd.f32 %v263, %v419
        %421 = vmatmul.f32.gmra.mxu0 %v317
        %v422 = vpop.f32.mrf.mxu0
        %v423 = vadd.f32 %v268, %v422
        %424 = vmatmul.f32.gmra.mxu0 %v320
        %v425 = vpop.f32.mrf.mxu0
        %v426 = vadd.f32 %v273, %v425
        %427 = vmatmul.f32.gmra.mxu0 %v323
        %v428 = vpop.f32.mrf.mxu0
        %v429 = vadd.f32 %v278, %v428
        %430 = vmatmul.f32.gmra.mxu0 %v326
        %v431 = vpop.f32.mrf.mxu0
        %v432 = vadd.f32 %v283, %v431
        %433 = vmatmul.f32.gmra.mxu0 %v329
        %v434 = vpop.f32.mrf.mxu0
        %v435 = vadd.f32 %v288, %v434
        %436 = vmatmul.f32.gmra.mxu0 %v332
        %v437 = vpop.f32.mrf.mxu0
        %v438 = vadd.f32 %v293, %v437
        %439 = vmatmul.f32.gmra.mxu0 %v335
        %v440 = vpop.f32.mrf.mxu0
        %v441 = vadd.f32 %v298, %v440
        %442 = vdwg.mxu0
        %443 = vst [vmem:[%s188] sm:$0xff] %v355
        %444 = vst [vmem:[%s188 + $0x8] sm:$0xff] %v408
        %445 = vst [vmem:[%s188 + $0x10] sm:$0xff] %v358
        %446 = vst [vmem:[%s188 + $0x18] sm:$0xff] %v411
        %447 = vst [vmem:[%s188 + $0x20] sm:$0xff] %v361
        %448 = vst [vmem:[%s188 + $0x28] sm:$0xff] %v414
        %449 = vst [vmem:[%s188 + $0x30] sm:$0xff] %v364
        %450 = vst [vmem:[%s188 + $0x38] sm:$0xff] %v417
        %451 = vst [vmem:[%s188 + $0x40] sm:$0xff] %v367
        %452 = vst [vmem:[%s188 + $0x48] sm:$0xff] %v420
        %453 = vst [vmem:[%s188 + $0x50] sm:$0xff] %v370
        %454 = vst [vmem:[%s188 + $0x58] sm:$0xff] %v423
        %455 = vst [vmem:[%s188 + $0x60] sm:$0xff] %v373
        %456 = vst [vmem:[%s188 + $0x68] sm:$0xff] %v426
        %457 = vst [vmem:[%s188 + $0x70] sm:$0xff] %v376
        %458 = vst [vmem:[%s188 + $0x78] sm:$0xff] %v429
        %459 = vst [vmem:[%s188 + $0x80] sm:$0xff] %v379
        %460 = vst [vmem:[%s188 + $0x88] sm:$0xff] %v432
        %461 = vst [vmem:[%s188 + $0x90] sm:$0xff] %v382
        %462 = vst [vmem:[%s188 + $0x98] sm:$0xff] %v435
        %463 = vst [vmem:[%s188 + $0xa0] sm:$0xff] %v385
        %464 = vst [vmem:[%s188 + $0xa8] sm:$0xff] %v438
        %465 = vst [vmem:[%s188 + $0xb0] sm:$0xff] %v388
        %466 = vst [vmem:[%s188 + $0xb8] sm:$0xff] %v441
        %s467 = sand.u32 %s109, 1
        %s468 = scalar_lea.sflag [#allocation3], %s467
        %s469 = sand.u32 %s109, 1
        %s470 = smul.addr %s469, 192
        %s471 = scalar_lea.vmem [#allocation2], %s470
        // Predicated region
        $region33: #{tpu_custom_call.1} parent=31 // pred_check
          %p472 = pneg %p119
        $region34: #{tpu_custom_call.1} parent=31 // pred_check_branch
          %474 = sbr.rel (%p472) target = $region36
        $region35: #{tpu_custom_call.1} parent=31 // pred_region
          %s475 = smul.u32 2, %s22
          %477 = vsyncadd %s468, 0
          %s478 = smul.addr %s21, 24
          %s479 = sadd.s32 %s475, %s478
          %s480 = smul.addr %s479, 8
          %s481 = scalar_lea.hbm %s3, %s480
          %s482 = sshll.u32 %s471, 4
          %s483 = int_to_ptr.vmem [resolvable:$true] %s482
          %s484 = sshll.u32 %s481, 4
          %s485 = int_to_ptr.hbm [resolvable:$true] %s484
          %490 = dma.vmem_to_hbm [thread:$0]  %s483, 3072, %s485, %s468, 256, 256, 16
        $region36: #{tpu_custom_call.1} parent=31 // pred_fallthru
          _
      $region32: #{tpu_custom_call.1} parent=5 // pred_fallthru
        _
      %p491 = scmp.le.s32.totalorder 2, %s12
      // Predicated region
      $region37: #{tpu_custom_call.1} parent=5 // pred_check
        %p492 = pneg %p491
      $region38: #{tpu_custom_call.1} parent=5 // pred_check_branch
        %494 = sbr.rel (%p492) target = $region40
      $region39: #{tpu_custom_call.1} parent=5 // pred_region
        %s495 = ssub.s32 %s12, 2
        // Predicated region
        $region41: #{tpu_custom_call.1} parent=39 // pred_check
          %p496 = pneg %p125
        $region42: #{tpu_custom_call.1} parent=39 // pred_check_branch
          %498 = sbr.rel (%p496) target = $region44
        $region43: #{tpu_custom_call.1} parent=39 // pred_region
          %s499 = sand.u32 %s110, 1
          %s500 = scalar_lea.sflag [#allocation3], %s499
          %s501 = sand.u32 %s110, 1
          %s502 = smul.addr %s501, 192
          %s503 = scalar_lea.vmem [#allocation2], %s502
          %505 = dma.done %s500, 3072
        $region44: #{tpu_custom_call.1} parent=39 // pred_fallthru
          _
      $region40: #{tpu_custom_call.1} parent=5 // pred_fallthru
        _
    $region6: #{tpu_custom_call.1} parent=1 // loop_footer
      %s16 = sadd.s32 1, %s12
    $region7: #{tpu_custom_call.1} parent=1 // loop_footer_branch
      %11 = sbr.rel target = $region3
    $region8: #{tpu_custom_call.1} parent=1 // loop_exit
      _
    %506 = vsyncpa [#allocation3], 1
    %s507 = scalar_lea.sflag [#allocation3], 1
    %508 = vsyncpa %s507, 1

</llo_original>
